<compile_context>
chip_gen: v7x
topology: tpu7x:2x2x1
jax: 0.10.0
libtpu: 0.0.40
codegen_flags: <defaults>
</compile_context>

<pallas_src>
import jax
import jax.numpy as jnp
from jax.experimental import pallas as pl
from jax.experimental.pallas import tpu as pltpu

LANE = 128  # TPU vreg lane width — pad all feature dims to this for lane-dense stores.


def _round_up(n, m):
    return ((n + m - 1) // m) * m


def _pad2d(arr, rows, cols):
    return jnp.pad(arr, ((0, rows - arr.shape[0]), (0, cols - arr.shape[1])))


def prepare_operands(x, a, params):
    """Pad feature dims to 128 lanes and cast matmul operands to bf16.

    Zero padding is exact: padded columns of W1/b1 produce h[:, hid:] == relu(0) == 0,
    and padded rows/cols of W2/b2 multiply those zeros, so results are unchanged.
    """
    f_in, hid = params["w1"].shape
    f_out = params["w2"].shape[1]
    f_in_p = _round_up(max(f_in, LANE), LANE)
    hid_p = _round_up(max(hid, LANE), LANE)
    f_out_p = _round_up(max(f_out, LANE), LANE)

    a_bf = a.astype(jnp.bfloat16)                                   # counts: exact in bf16
    x_bf = _pad2d(x, x.shape[0], f_in_p).astype(jnp.bfloat16)
    w1p = _pad2d(params["w1"], f_in_p, hid_p).astype(jnp.bfloat16)
    b1p = _pad2d(params["b1"], 1, hid_p).astype(jnp.float32)
    w2p = _pad2d(params["w2"], hid_p, f_out_p).astype(jnp.bfloat16)
    b2p = _pad2d(params["b2"], 1, f_out_p).astype(jnp.float32)
    return a_bf, x_bf, w1p, b1p, w2p, b2p, f_out


def _gcn2_fused_kernel(a_ref, x_ref, w1_ref, b1_ref, w2_ref, b2_ref, o_ref):
    # Everything is resident in VMEM; four MXU matmuls (bf16 in, f32 acc) + f32 epilogues.
    a = a_ref[...]                                                  # [N, N] bf16

    # ---- layer 1: h = relu(A @ (X @ W1) + b1) ----
    xw = jnp.dot(x_ref[...], w1_ref[...], preferred_element_type=jnp.float32)
    h = jnp.dot(a, xw.astype(jnp.bfloat16), preferred_element_type=jnp.float32)
    h = jnp.maximum(h + b1_ref[...], 0.0)                           # f32 epilogue (v5e: no bf16 VPU)

    # F.dropout(p=0.5): identity in eval mode.
    # TODO(synk): training-mode dropout would use pltpu.prng_seed + pltpu.prng_random_bits.

    # ---- layer 2: out = A @ (h @ W2) + b2 ----
    hw = jnp.dot(h.astype(jnp.bfloat16), w2_ref[...], preferred_element_type=jnp.float32)
    out = jnp.dot(a, hw.astype(jnp.bfloat16), preferred_element_type=jnp.float32)
    o_ref[...] = (out + b2_ref[...]).astype(o_ref.dtype)            # lane-dense f32 store


def gcn2_fused(a_bf, x_bf, w1p, b1p, w2p, b2p):
    n = a_bf.shape[0]
    f_out_p = w2p.shape[1]
    vmem = pl.BlockSpec(memory_space=pltpu.MemorySpace.VMEM)
    return pl.pallas_call(
        _gcn2_fused_kernel,
        out_shape=jax.ShapeDtypeStruct((n, f_out_p), jnp.float32),
        in_specs=[vmem] * 6,
        out_specs=vmem,
    )(a_bf, x_bf, w1p, b1p, w2p, b2p)


def net_forward(x, a, params):
    a_bf, x_bf, w1p, b1p, w2p, b2p, f_out = prepare_operands(x, a, params)
    out_padded = gcn2_fused(a_bf, x_bf, w1p, b1p, w2p, b2p)
    return out_padded[:, :f_out]


def reference_forward_bf16(x, a, params):
    """Plain-JAX reference with the identical bf16-input / f32-accumulate pipeline."""
    a_bf, x_bf, w1p, b1p, w2p, b2p, f_out = prepare_operands(x, a, params)
    xw = jnp.dot(x_bf, w1p, preferred_element_type=jnp.float32)
    h = jnp.dot(a_bf, xw.astype(jnp.bfloat16), preferred_element_type=jnp.float32)
    h = jnp.maximum(h + b1p, 0.0)
    hw = jnp.dot(h.astype(jnp.bfloat16), w2p, preferred_element_type=jnp.float32)
    out = jnp.dot(a_bf, hw.astype(jnp.bfloat16), preferred_element_type=jnp.float32) + b2p
    return out[:, :f_out]


def reference_forward_f32(x, a, params):
    h = jnp.maximum(a @ (x @ params["w1"]) + params["b1"], 0.0)
    return a @ (h @ params["w2"]) + params["b2"]


def glorot(key, shape):
    fan_in, fan_out = shape
    limit = jnp.sqrt(6.0 / (fan_in + fan_out))
    return jax.random.uniform(key, shape, jnp.float32, -limit, limit)


def build_dense_adjacency(edge_index, num_nodes):
    src, dst = edge_index[0], edge_index[1]
    a = jnp.zeros((num_nodes, num_nodes), jnp.float32)
    # message from src j flows to dst i, summed: A[i, j] += 1
    return a.at[dst, src].add(1.0)


if __name__ == "__main__":
    # Small deterministic problem.
    N = 64            # number of graph nodes
    INPUT_DIM = 8
    HIDDEN_DIM = 16
    NUM_DAYS = 10
    NUM_EDGES = 256

    root = jax.random.PRNGKey(0)
    k_x, k_src, k_dst, k_w1, k_w2 = jax.random.split(root, 5)

    x = jax.random.normal(k_x, (N, INPUT_DIM), jnp.float32)
    src = jax.random.randint(k_src, (NUM_EDGES,), 0, N)
    dst = jax.random.randint(k_dst, (NUM_EDGES,), 0, N)
    edge_index = jnp.stack([src, dst], axis=0)  # [2, E]

    a = build_dense_adjacency(edge_index, N)

    params = {
        "w1": glorot(k_w1, (INPUT_DIM, HIDDEN_DIM)),
        "b1": jnp.zeros((1, HIDDEN_DIM), jnp.float32),
        "w2": glorot(k_w2, (HIDDEN_DIM, NUM_DAYS)),
        "b2": jnp.zeros((1, NUM_DAYS), jnp.float32),
    }

    fwd = jax.jit(net_forward)
    out = jax.block_until_ready(fwd(x, a, params))
    assert out.shape == (N, NUM_DAYS), out.shape

    # Tight check against a plain-JAX reference with identical bf16/f32 numerics.
    ref_bf16 = reference_forward_bf16(x, a, params)
    assert jnp.allclose(out, ref_bf16, atol=1e-3, rtol=1e-3), "mismatch vs bf16 reference"

    # Loose sanity check against the pure-f32 math (bf16 matmul inputs => relaxed tol).
    ref_f32 = reference_forward_f32(x, a, params)
    assert jnp.allclose(out, ref_f32, atol=0.3, rtol=0.1), "mismatch vs f32 reference"

    print("KERNEL_OK")
</pallas_src>

<mosaic_0001>
module attributes {stable_mosaic.version = 11 : i64} {
  func.func @_gcn2_fused_kernel(%arg0: memref<64x64xbf16, #tpu.memory_space<vmem>>, %arg1: memref<64x128xbf16, #tpu.memory_space<vmem>>, %arg2: memref<128x128xbf16, #tpu.memory_space<vmem>>, %arg3: memref<1x128xf32, #tpu.memory_space<vmem>>, %arg4: memref<128x128xbf16, #tpu.memory_space<vmem>>, %arg5: memref<1x128xf32, #tpu.memory_space<vmem>>, %arg6: memref<64x128xf32, #tpu.memory_space<vmem>>) attributes {dimension_semantics = [], scalar_prefetch = 0 : i64, scratch_operands = 0 : i64, tpu.core_type = #tpu.core_type<tc>} {
    %c0 = arith.constant 0 : index
    %c0_0 = arith.constant 0 : index
    %0 = vector.load %arg0[%c0, %c0_0] : memref<64x64xbf16, #tpu.memory_space<vmem>>, vector<64x64xbf16>
    %c0_1 = arith.constant 0 : index
    %c0_2 = arith.constant 0 : index
    %1 = vector.load %arg1[%c0_1, %c0_2] : memref<64x128xbf16, #tpu.memory_space<vmem>>, vector<64x128xbf16>
    %c0_3 = arith.constant 0 : index
    %c0_4 = arith.constant 0 : index
    %2 = vector.load %arg2[%c0_3, %c0_4] : memref<128x128xbf16, #tpu.memory_space<vmem>>, vector<128x128xbf16>
    %cst = arith.constant dense<0.000000e+00> : vector<64x128xf32>
    %3 = tpu.matmul %1, %2, %cst {dimension_numbers = #tpu.dot_dimension_numbers<[1], [0], [0], [1], [0, 0, 1, 1], [], []>} : vector<64x128xbf16>, vector<128x128xbf16>, vector<64x128xf32> -> vector<64x128xf32>
    %4 = arith.truncf %3 : vector<64x128xf32> to vector<64x128xbf16>
    %cst_5 = arith.constant dense<0.000000e+00> : vector<64x128xf32>
    %5 = tpu.matmul %0, %4, %cst_5 {dimension_numbers = #tpu.dot_dimension_numbers<[1], [0], [0], [1], [0, 0, 1, 1], [], []>} : vector<64x64xbf16>, vector<64x128xbf16>, vector<64x128xf32> -> vector<64x128xf32>
    %c0_6 = arith.constant 0 : index
    %c0_7 = arith.constant 0 : index
    %6 = vector.load %arg3[%c0_6, %c0_7] : memref<1x128xf32, #tpu.memory_space<vmem>>, vector<1x128xf32>
    %7 = vector.broadcast %6 : vector<1x128xf32> to vector<64x128xf32>
    %8 = arith.addf %5, %7 : vector<64x128xf32>
    %cst_8 = arith.constant 0.000000e+00 : f32
    %9 = vector.broadcast %cst_8 : f32 to vector<64x128xf32>
    %10 = arith.maximumf %8, %9 : vector<64x128xf32>
    %11 = arith.truncf %10 : vector<64x128xf32> to vector<64x128xbf16>
    %c0_9 = arith.constant 0 : index
    %c0_10 = arith.constant 0 : index
    %12 = vector.load %arg4[%c0_9, %c0_10] : memref<128x128xbf16, #tpu.memory_space<vmem>>, vector<128x128xbf16>
    %cst_11 = arith.constant dense<0.000000e+00> : vector<64x128xf32>
    %13 = tpu.matmul %11, %12, %cst_11 {dimension_numbers = #tpu.dot_dimension_numbers<[1], [0], [0], [1], [0, 0, 1, 1], [], []>} : vector<64x128xbf16>, vector<128x128xbf16>, vector<64x128xf32> -> vector<64x128xf32>
    %14 = arith.truncf %13 : vector<64x128xf32> to vector<64x128xbf16>
    %cst_12 = arith.constant dense<0.000000e+00> : vector<64x128xf32>
    %15 = tpu.matmul %0, %14, %cst_12 {dimension_numbers = #tpu.dot_dimension_numbers<[1], [0], [0], [1], [0, 0, 1, 1], [], []>} : vector<64x64xbf16>, vector<64x128xbf16>, vector<64x128xf32> -> vector<64x128xf32>
    %c0_13 = arith.constant 0 : index
    %c0_14 = arith.constant 0 : index
    %16 = vector.load %arg5[%c0_13, %c0_14] : memref<1x128xf32, #tpu.memory_space<vmem>>, vector<1x128xf32>
    %17 = vector.broadcast %16 : vector<1x128xf32> to vector<64x128xf32>
    %18 = arith.addf %15, %17 : vector<64x128xf32>
    %c0_15 = arith.constant 0 : index
    %c0_16 = arith.constant 0 : index
    %19 = vector.load %arg6[%c0_15, %c0_16] : memref<64x128xf32, #tpu.memory_space<vmem>>, vector<64x128xf32>
    tpu.vector_store %arg6[%c0_15, %c0_16], %18 {strides = array<i32>} : memref<64x128xf32, #tpu.memory_space<vmem>>, vector<64x128xf32>,
    return
  }
}

</mosaic_0001>

<llo_original>
// kernel: net_forward.1
$region0: #{net_forward.1}
  #allocation0 [shape = 'u32[]', space=smem, size = 0x4, offset = 0x4, fixed_abs, tag = 'smem constant byte address 0x4 - core index']
  #allocation1 [shape = 'u32[144,128]{1,0:T(1,128)}', space=vmem, size = 0x12000, scoped, tag = 'internal scratch']
  %s0 = inlined_call_operand.vmem [shape: bf16[64,64], index: 0, kind: input, shape index: {}]
  %s1 = inlined_call_operand.vmem [shape: bf16[64,128], index: 1, kind: input, shape index: {}]
  %s2 = inlined_call_operand.vmem [shape: bf16[128,128], index: 2, kind: input, shape index: {}]
  %s3 = inlined_call_operand.vmem [shape: f32[1,128], index: 3, kind: input, shape index: {}]
  %s4 = inlined_call_operand.vmem [shape: bf16[128,128], index: 4, kind: input, shape index: {}]
  %s5 = inlined_call_operand.vmem [shape: f32[1,128], index: 5, kind: input, shape index: {}]
  %s6 = inlined_call_operand.vmem [shape: f32[64,128], index: 6, kind: output, shape index: {}]
  %s7 = sld [smem:[#allocation0]]
  $region34: #{net_forward.1} parent=0
    _
  %s9 = ssub.s32 1, %s7
  %s10 = scalar_select 0, %s9, %s7
  // Predicated region
  $region2: #{net_forward.1} parent=0 // pred_check
    _
  $region3: #{net_forward.1} parent=0 // pred_check_branch
    %12 = sbr.rel (0) target = $region5
  $region4: #{net_forward.1} parent=0 // pred_region
    _
  $region5: #{net_forward.1} parent=0 // pred_fallthru
    _
  // Predicated region
  $region6: #{net_forward.1} parent=0 // pred_check
    _
  $region7: #{net_forward.1} parent=0 // pred_check_branch
    %14 = sbr.rel (0) target = $region9
  $region8: #{net_forward.1} parent=0 // pred_region
    _
  $region9: #{net_forward.1} parent=0 // pred_fallthru
    _
  // Predicated region
  $region10: #{net_forward.1} parent=0 // pred_check
    _
  $region11: #{net_forward.1} parent=0 // pred_check_branch
    %16 = sbr.rel (0) target = $region13
  $region12: #{net_forward.1} parent=0 // pred_region
    _
  $region13: #{net_forward.1} parent=0 // pred_fallthru
    _
  // Predicated region
  $region14: #{net_forward.1} parent=0 // pred_check
    _
  $region15: #{net_forward.1} parent=0 // pred_check_branch
    %18 = sbr.rel (0) target = $region17
  $region16: #{net_forward.1} parent=0 // pred_region
    _
  $region17: #{net_forward.1} parent=0 // pred_fallthru
    _
  // Predicated region
  $region18: #{net_forward.1} parent=0 // pred_check
    _
  $region19: #{net_forward.1} parent=0 // pred_check_branch
    %20 = sbr.rel (0) target = $region21
  $region20: #{net_forward.1} parent=0 // pred_region
    _
  $region21: #{net_forward.1} parent=0 // pred_fallthru
    _
  // Predicated region
  $region22: #{net_forward.1} parent=0 // pred_check
    _
  $region23: #{net_forward.1} parent=0 // pred_check_branch
    %22 = sbr.rel (0) target = $region25
  $region24: #{net_forward.1} parent=0 // pred_region
    _
  $region25: #{net_forward.1} parent=0 // pred_fallthru
    _
  %v24 = vld [vmem:[%s0] sm:$0xf]
  %v25 = vld [vmem:[%s0 + $0x4] sm:$0xf]
  %v26 = vld [vmem:[%s0 + $0x8] sm:$0xf]
  %v27 = vld [vmem:[%s0 + $0xc] sm:$0xf]
  %v28 = vld [vmem:[%s0 + $0x10] sm:$0xf]
  %v29 = vld [vmem:[%s0 + $0x14] sm:$0xf]
  %v30 = vld [vmem:[%s0 + $0x18] sm:$0xf]
  %v31 = vld [vmem:[%s0 + $0x1c] sm:$0xf]
  %v32 = vld [vmem:[%s1] sm:$0xf]
  %v33 = vld [vmem:[%s1 + $0x4] sm:$0xf]
  %v34 = vld [vmem:[%s1 + $0x8] sm:$0xf]
  %v35 = vld [vmem:[%s1 + $0xc] sm:$0xf]
  %v36 = vld [vmem:[%s1 + $0x10] sm:$0xf]
  %v37 = vld [vmem:[%s1 + $0x14] sm:$0xf]
  %v38 = vld [vmem:[%s1 + $0x18] sm:$0xf]
  %v39 = vld [vmem:[%s1 + $0x1c] sm:$0xf]
  %v40 = vld [vmem:[%s2] sm:$0xf]
  %v41 = vld [vmem:[%s2 + $0x4] sm:$0xf]
  %v42 = vld [vmem:[%s2 + $0x8] sm:$0xf]
  %v43 = vld [vmem:[%s2 + $0xc] sm:$0xf]
  %v44 = vld [vmem:[%s2 + $0x10] sm:$0xf]
  %v45 = vld [vmem:[%s2 + $0x14] sm:$0xf]
  %v46 = vld [vmem:[%s2 + $0x18] sm:$0xf]
  %v47 = vld [vmem:[%s2 + $0x1c] sm:$0xf]
  %v48 = vld [vmem:[%s2 + $0x20] sm:$0xf]
  %v49 = vld [vmem:[%s2 + $0x24] sm:$0xf]
  %v50 = vld [vmem:[%s2 + $0x28] sm:$0xf]
  %v51 = vld [vmem:[%s2 + $0x2c] sm:$0xf]
  %v52 = vld [vmem:[%s2 + $0x30] sm:$0xf]
  %v53 = vld [vmem:[%s2 + $0x34] sm:$0xf]
  %v54 = vld [vmem:[%s2 + $0x38] sm:$0xf]
  %v55 = vld [vmem:[%s2 + $0x3c] sm:$0xf]
  %v64 = vunpack.c.l.b16 %v32
  %v65 = vunpack.c.l.b16 %v33
  %v66 = vunpack.c.l.b16 %v34
  %v67 = vunpack.c.l.b16 %v35
  %v68 = vunpack.c.l.b16 %v36
  %v69 = vunpack.c.l.b16 %v37
  %v70 = vunpack.c.l.b16 %v38
  %v71 = vunpack.c.l.b16 %v39
  %v72 = vpack.c.b16 %v65, %v64
  %v73 = vpack.c.b16 %v67, %v66
  %v74 = vpack.c.b16 %v69, %v68
  %v75 = vpack.c.b16 %v71, %v70
  %v96 = vunpack.c.l.b16 %v40
  %v97 = vunpack.c.l.b16 %v41
  %v98 = vunpack.c.l.b16 %v42
  %v99 = vunpack.c.l.b16 %v43
  %v100 = vunpack.c.l.b16 %v44
  %v101 = vunpack.c.l.b16 %v45
  %v102 = vunpack.c.l.b16 %v46
  %v103 = vunpack.c.l.b16 %v47
  %v104 = vunpack.c.l.b16 %v48
  %v105 = vunpack.c.l.b16 %v49
  %v106 = vunpack.c.l.b16 %v50
  %v107 = vunpack.c.l.b16 %v51
  %v108 = vunpack.c.l.b16 %v52
  %v109 = vunpack.c.l.b16 %v53
  %v110 = vunpack.c.l.b16 %v54
  %v111 = vunpack.c.l.b16 %v55
  %v112 = vpack.c.b16 %v97, %v96
  %v113 = vpack.c.b16 %v99, %v98
  %v114 = vpack.c.b16 %v101, %v100
  %v115 = vpack.c.b16 %v103, %v102
  %v116 = vpack.c.b16 %v105, %v104
  %v117 = vpack.c.b16 %v107, %v106
  %v118 = vpack.c.b16 %v109, %v108
  %v119 = vpack.c.b16 %v111, %v110
  %128 = vmatprep.subr.bf16.mxu0 0
  %129 = vmatpush1.bf16.msra.mxu0 %v112
  %130 = vmatprep.subr.bf16.mxu0 0
  %131 = vmatpush1.bf16.msra.mxu0 %v113
  %132 = vmatprep.subr.bf16.mxu0 0
  %133 = vmatpush1.bf16.msra.mxu0 %v114
  %134 = vmatprep.subr.bf16.mxu0 0
  %135 = vmatpush1.bf16.msra.mxu0 %v115
  %136 = vmatprep.subr.bf16.mxu0 0
  %137 = vmatpush1.bf16.msra.mxu0 %v116
  %138 = vmatprep.subr.bf16.mxu0 0
  %139 = vmatpush1.bf16.msra.mxu0 %v117
  %140 = vmatprep.subr.bf16.mxu0 0
  %141 = vmatpush1.bf16.msra.mxu0 %v118
  %142 = vmatprep.subr.bf16.mxu0 0
  %143 = vmatpush1.bf16.msra.mxu0 %v119
  %144 = vmatprep.subr.bf16.mxu0 0
  %145 = vmatpush1.bf16.msra.mxu0 0
  %146 = vmatprep.subr.bf16.mxu0 0
  %147 = vmatpush1.bf16.msra.mxu0 0
  %148 = vmatprep.subr.bf16.mxu0 0
  %149 = vmatpush1.bf16.msra.mxu0 0
  %150 = vmatprep.subr.bf16.mxu0 0
  %151 = vmatpush1.bf16.msra.mxu0 0
  %152 = vmatprep.subr.bf16.mxu0 0
  %153 = vmatpush1.bf16.msra.mxu0 0
  %154 = vmatprep.subr.bf16.mxu0 0
  %155 = vmatpush1.bf16.msra.mxu0 0
  %156 = vmatprep.subr.bf16.mxu0 0
  %157 = vmatpush1.bf16.msra.mxu0 0
  %158 = vmatprep.subr.bf16.mxu0 0
  %159 = vmatpush1.bf16.msra.mxu0 0
  %160 = vmatprep.mubr.bf16.mxu0 0
  %161 = vmatmul.mubr.bf16.gmra.mrb[0].mxu0 %v72
  %v162 = vpop.f32.mrb[0].mxu0
  %v163 = vadd.f32 0.0, %v162
  %v164 = vpop.f32.mrb[0].mxu0
  %v165 = vpop.f32.mrb[0].mxu0
  %v166 = vadd.f32 0.0, %v165
  %v167 = vpop.f32.mrb[0].mxu0
  %168 = vmatprep.mubr.bf16.mxu0 0
  %169 = vmatmul.mubr.bf16.gmra.mrb[0].mxu0 %v73
  %v170 = vpop.f32.mrb[0].mxu0
  %v171 = vadd.f32 0.0, %v170
  %v172 = vpop.f32.mrb[0].mxu0
  %v173 = vpop.f32.mrb[0].mxu0
  %v174 = vadd.f32 0.0, %v173
  %v175 = vpop.f32.mrb[0].mxu0
  %176 = vmatprep.mubr.bf16.mxu0 0
  %177 = vmatmul.mubr.bf16.gmra.mrb[0].mxu0 %v74
  %v178 = vpop.f32.mrb[0].mxu0
  %v179 = vadd.f32 0.0, %v178
  %v180 = vpop.f32.mrb[0].mxu0
  %v181 = vpop.f32.mrb[0].mxu0
  %v182 = vadd.f32 0.0, %v181
  %v183 = vpop.f32.mrb[0].mxu0
  %184 = vmatprep.mubr.bf16.mxu0 0
  %185 = vmatmul.mubr.bf16.gmra.mrb[0].mxu0 %v75
  %v186 = vpop.f32.mrb[0].mxu0
  %v187 = vadd.f32 0.0, %v186
  %v188 = vpop.f32.mrb[0].mxu0
  %v189 = vpop.f32.mrb[0].mxu0
  %v190 = vadd.f32 0.0, %v189
  %v191 = vpop.f32.mrb[0].mxu0
  %192 = vdwg.mxu0
  %v193 = vpack.c.bf16 %v166, %v163
  %v194 = vpack.c.bf16 %v174, %v171
  %v195 = vpack.c.bf16 %v182, %v179
  %v196 = vpack.c.bf16 %v190, %v187
  %v197 = vld [vmem:[%s3] sm:$0x1]
  %v199 = vlaneseq
  %v200 = vshrl.u32 %v199, 7
  %v201 = vsub.s32 0, %v200
  %v202 = vrot.slane %v197, %v201
  %v212 = vunpack.c.l.b16 %v24
  %v213 = vunpack.c.l.b16 %v25
  %v214 = vunpack.c.l.b16 %v26
  %v215 = vunpack.c.l.b16 %v27
  %v216 = vunpack.c.l.b16 %v28
  %v217 = vunpack.c.l.b16 %v29
  %v218 = vunpack.c.l.b16 %v30
  %v219 = vunpack.c.l.b16 %v31
  %v220 = vpack.c.b16 %v213, %v212
  %v221 = vpack.c.b16 %v215, %v214
  %v222 = vpack.c.b16 %v217, %v216
  %v223 = vpack.c.b16 %v219, %v218
  %vm224 = vcmask 523264
  %v226 = vsel %vm224, %v220, 0
  %v229 = vsel %vm224, %v221, 0
  %v232 = vsel %vm224, %v222, 0
  %v235 = vsel %vm224, %v223, 0
  %237 = vmatprep.subr.bf16.mxu0 0
  %238 = vmatpush1.bf16.msra.mxu0 %v193
  %239 = vmatprep.subr.bf16.mxu0 0
  %240 = vmatpush1.bf16.msra.mxu0 %v194
  %241 = vmatprep.subr.bf16.mxu0 0
  %242 = vmatpush1.bf16.msra.mxu0 %v195
  %243 = vmatprep.subr.bf16.mxu0 0
  %244 = vmatpush1.bf16.msra.mxu0 %v196
  %245 = vmatprep.subr.bf16.mxu0 0
  %246 = vmatpush1.bf16.msra.mxu0 0
  %247 = vmatprep.subr.bf16.mxu0 0
  %248 = vmatpush1.bf16.msra.mxu0 0
  %249 = vmatprep.subr.bf16.mxu0 0
  %250 = vmatpush1.bf16.msra.mxu0 0
  %251 = vmatprep.subr.bf16.mxu0 0
  %252 = vmatpush1.bf16.msra.mxu0 0
  %253 = vmatprep.subr.bf16.mxu0 0
  %254 = vmatpush1.bf16.msra.mxu0 0
  %255 = vmatprep.subr.bf16.mxu0 0
  %256 = vmatpush1.bf16.msra.mxu0 0
  %257 = vmatprep.subr.bf16.mxu0 0
  %258 = vmatpush1.bf16.msra.mxu0 0
  %259 = vmatprep.subr.bf16.mxu0 0
  %260 = vmatpush1.bf16.msra.mxu0 0
  %261 = vmatprep.subr.bf16.mxu0 0
  %262 = vmatpush1.bf16.msra.mxu0 0
  %263 = vmatprep.subr.bf16.mxu0 0
  %264 = vmatpush1.bf16.msra.mxu0 0
  %265 = vmatprep.subr.bf16.mxu0 0
  %266 = vmatpush1.bf16.msra.mxu0 0
  %267 = vmatprep.subr.bf16.mxu0 0
  %268 = vmatpush1.bf16.msra.mxu0 0
  %269 = vmatprep.mubr.bf16.mxu0 0
  %270 = vmatmul.mubr.bf16.gmra.mrb[0].mxu0 %v226
  %v271 = vpop.f32.mrb[0].mxu0
  %v272 = vadd.f32 %v202, %v271
  %v273 = vpop.f32.mrb[0].mxu0
  %v274 = vpop.f32.mrb[0].mxu0
  %v275 = vadd.f32 %v202, %v274
  %v276 = vpop.f32.mrb[0].mxu0
  %277 = vmatprep.mubr.bf16.mxu0 0
  %278 = vmatmul.mubr.bf16.gmra.mrb[0].mxu0 %v229
  %v279 = vpop.f32.mrb[0].mxu0
  %v280 = vadd.f32 %v202, %v279
  %v281 = vpop.f32.mrb[0].mxu0
  %v282 = vpop.f32.mrb[0].mxu0
  %v283 = vadd.f32 %v202, %v282
  %v284 = vpop.f32.mrb[0].mxu0
  %285 = vmatprep.mubr.bf16.mxu0 0
  %286 = vmatmul.mubr.bf16.gmra.mrb[0].mxu0 %v232
  %v287 = vpop.f32.mrb[0].mxu0
  %v288 = vadd.f32 %v202, %v287
  %v289 = vpop.f32.mrb[0].mxu0
  %v290 = vpop.f32.mrb[0].mxu0
  %v291 = vadd.f32 %v202, %v290
  %v292 = vpop.f32.mrb[0].mxu0
  %293 = vmatprep.mubr.bf16.mxu0 0
  %294 = vmatmul.mubr.bf16.gmra.mrb[0].mxu0 %v235
  %v295 = vpop.f32.mrb[0].mxu0
  %v296 = vadd.f32 %v202, %v295
  %v297 = vpop.f32.mrb[0].mxu0
  %v298 = vpop.f32.mrb[0].mxu0
  %v299 = vadd.f32 %v202, %v298
  %v300 = vpop.f32.mrb[0].mxu0
  %301 = vdwg.mxu0
  %v302 = vmax.f32 %v272, 0.0
  %v303 = vmax.f32 %v275, 0.0
  %v304 = vmax.f32 %v280, 0.0
  %v305 = vmax.f32 %v283, 0.0
  %v306 = vmax.f32 %v288, 0.0
  %v307 = vmax.f32 %v291, 0.0
  %v308 = vmax.f32 %v296, 0.0
  %v309 = vmax.f32 %v299, 0.0
  %v310 = vpack.c.bf16 %v303, %v302
  %v311 = vpack.c.bf16 %v305, %v304
  %v312 = vpack.c.bf16 %v307, %v306
  %v313 = vpack.c.bf16 %v309, %v308
  %v314 = vld [vmem:[%s4] sm:$0xf]
  %v315 = vld [vmem:[%s4 + $0x4] sm:$0xf]
  %v316 = vld [vmem:[%s4 + $0x8] sm:$0xf]
  %v317 = vld [vmem:[%s4 + $0xc] sm:$0xf]
  %v318 = vld [vmem:[%s4 + $0x10] sm:$0xf]
  %v319 = vld [vmem:[%s4 + $0x14] sm:$0xf]
  %v320 = vld [vmem:[%s4 + $0x18] sm:$0xf]
  %v321 = vld [vmem:[%s4 + $0x1c] sm:$0xf]
  %v322 = vld [vmem:[%s4 + $0x20] sm:$0xf]
  %v323 = vld [vmem:[%s4 + $0x24] sm:$0xf]
  %v324 = vld [vmem:[%s4 + $0x28] sm:$0xf]
  %v325 = vld [vmem:[%s4 + $0x2c] sm:$0xf]
  %v326 = vld [vmem:[%s4 + $0x30] sm:$0xf]
  %v327 = vld [vmem:[%s4 + $0x34] sm:$0xf]
  %v328 = vld [vmem:[%s4 + $0x38] sm:$0xf]
  %v329 = vld [vmem:[%s4 + $0x3c] sm:$0xf]
  %v346 = vunpack.c.l.b16 %v314
  %v347 = vunpack.c.l.b16 %v315
  %v348 = vunpack.c.l.b16 %v316
  %v349 = vunpack.c.l.b16 %v317
  %v350 = vunpack.c.l.b16 %v318
  %v351 = vunpack.c.l.b16 %v319
  %v352 = vunpack.c.l.b16 %v320
  %v353 = vunpack.c.l.b16 %v321
  %v354 = vunpack.c.l.b16 %v322
  %v355 = vunpack.c.l.b16 %v323
  %v356 = vunpack.c.l.b16 %v324
  %v357 = vunpack.c.l.b16 %v325
  %v358 = vunpack.c.l.b16 %v326
  %v359 = vunpack.c.l.b16 %v327
  %v360 = vunpack.c.l.b16 %v328
  %v361 = vunpack.c.l.b16 %v329
  %v362 = vpack.c.b16 %v347, %v346
  %v363 = vpack.c.b16 %v349, %v348
  %v364 = vpack.c.b16 %v351, %v350
  %v365 = vpack.c.b16 %v353, %v352
  %v366 = vpack.c.b16 %v355, %v354
  %v367 = vpack.c.b16 %v357, %v356
  %v368 = vpack.c.b16 %v359, %v358
  %v369 = vpack.c.b16 %v361, %v360
  %378 = vmatprep.subr.bf16.mxu0 0
  %379 = vmatpush1.bf16.msra.mxu0 %v362
  %380 = vmatprep.subr.bf16.mxu0 0
  %381 = vmatpush1.bf16.msra.mxu0 %v363
  %382 = vmatprep.subr.bf16.mxu0 0
  %383 = vmatpush1.bf16.msra.mxu0 %v364
  %384 = vmatprep.subr.bf16.mxu0 0
  %385 = vmatpush1.bf16.msra.mxu0 %v365
  %386 = vmatprep.subr.bf16.mxu0 0
  %387 = vmatpush1.bf16.msra.mxu0 %v366
  %388 = vmatprep.subr.bf16.mxu0 0
  %389 = vmatpush1.bf16.msra.mxu0 %v367
  %390 = vmatprep.subr.bf16.mxu0 0
  %391 = vmatpush1.bf16.msra.mxu0 %v368
  %392 = vmatprep.subr.bf16.mxu0 0
  %393 = vmatpush1.bf16.msra.mxu0 %v369
  %394 = vmatprep.subr.bf16.mxu0 0
  %395 = vmatpush1.bf16.msra.mxu0 0
  %396 = vmatprep.subr.bf16.mxu0 0
  %397 = vmatpush1.bf16.msra.mxu0 0
  %398 = vmatprep.subr.bf16.mxu0 0
  %399 = vmatpush1.bf16.msra.mxu0 0
  %400 = vmatprep.subr.bf16.mxu0 0
  %401 = vmatpush1.bf16.msra.mxu0 0
  %402 = vmatprep.subr.bf16.mxu0 0
  %403 = vmatpush1.bf16.msra.mxu0 0
  %404 = vmatprep.subr.bf16.mxu0 0
  %405 = vmatpush1.bf16.msra.mxu0 0
  %406 = vmatprep.subr.bf16.mxu0 0
  %407 = vmatpush1.bf16.msra.mxu0 0
  %408 = vmatprep.subr.bf16.mxu0 0
  %409 = vmatpush1.bf16.msra.mxu0 0
  %410 = vmatprep.mubr.bf16.mxu0 0
  %411 = vmatmul.mubr.bf16.gmra.mrb[0].mxu0 %v310
  %v412 = vpop.f32.mrb[0].mxu0
  %v413 = vadd.f32 0.0, %v412
  %v414 = vpop.f32.mrb[0].mxu0
  %v415 = vpop.f32.mrb[0].mxu0
  %v416 = vadd.f32 0.0, %v415
  %v417 = vpop.f32.mrb[0].mxu0
  %418 = vmatprep.mubr.bf16.mxu0 0
  %419 = vmatmul.mubr.bf16.gmra.mrb[0].mxu0 %v311
  %v420 = vpop.f32.mrb[0].mxu0
  %v421 = vadd.f32 0.0, %v420
  %v422 = vpop.f32.mrb[0].mxu0
  %v423 = vpop.f32.mrb[0].mxu0
  %v424 = vadd.f32 0.0, %v423
  %v425 = vpop.f32.mrb[0].mxu0
  %426 = vmatprep.mubr.bf16.mxu0 0
  %427 = vmatmul.mubr.bf16.gmra.mrb[0].mxu0 %v312
  %v428 = vpop.f32.mrb[0].mxu0
  %v429 = vadd.f32 0.0, %v428
  %v430 = vpop.f32.mrb[0].mxu0
  %v431 = vpop.f32.mrb[0].mxu0
  %v432 = vadd.f32 0.0, %v431
  %v433 = vpop.f32.mrb[0].mxu0
  %434 = vmatprep.mubr.bf16.mxu0 0
  %435 = vmatmul.mubr.bf16.gmra.mrb[0].mxu0 %v313
  %v436 = vpop.f32.mrb[0].mxu0
  %v437 = vadd.f32 0.0, %v436
  %v438 = vpop.f32.mrb[0].mxu0
  %v439 = vpop.f32.mrb[0].mxu0
  %v440 = vadd.f32 0.0, %v439
  %v441 = vpop.f32.mrb[0].mxu0
  %442 = vdwg.mxu0
  %v443 = vpack.c.bf16 %v416, %v413
  %v444 = vpack.c.bf16 %v424, %v421
  %v445 = vpack.c.bf16 %v432, %v429
  %v446 = vpack.c.bf16 %v440, %v437
  %v447 = vld [vmem:[%s5] sm:$0x1]
  %v449 = vlaneseq
  %v450 = vshrl.u32 %v449, 7
  %v451 = vsub.s32 0, %v450
  %v452 = vrot.slane %v447, %v451
  %454 = vmatprep.subr.bf16.mxu0 0
  %455 = vmatpush1.bf16.msra.mxu0 %v443
  %456 = vmatprep.subr.bf16.mxu0 0
  %457 = vmatpush1.bf16.msra.mxu0 %v444
  %458 = vmatprep.subr.bf16.mxu0 0
  %459 = vmatpush1.bf16.msra.mxu0 %v445
  %460 = vmatprep.subr.bf16.mxu0 0
  %461 = vmatpush1.bf16.msra.mxu0 %v446
  %462 = vmatprep.subr.bf16.mxu0 0
  %463 = vmatpush1.bf16.msra.mxu0 0
  %464 = vmatprep.subr.bf16.mxu0 0
  %465 = vmatpush1.bf16.msra.mxu0 0
  %466 = vmatprep.subr.bf16.mxu0 0
  %467 = vmatpush1.bf16.msra.mxu0 0
  %468 = vmatprep.subr.bf16.mxu0 0
  %469 = vmatpush1.bf16.msra.mxu0 0
  %470 = vmatprep.subr.bf16.mxu0 0
  %471 = vmatpush1.bf16.msra.mxu0 0
  %472 = vmatprep.subr.bf16.mxu0 0
  %473 = vmatpush1.bf16.msra.mxu0 0
  %474 = vmatprep.subr.bf16.mxu0 0
  %475 = vmatpush1.bf16.msra.mxu0 0
  %476 = vmatprep.subr.bf16.mxu0 0
  %477 = vmatpush1.bf16.msra.mxu0 0
  %478 = vmatprep.subr.bf16.mxu0 0
  %479 = vmatpush1.bf16.msra.mxu0 0
  %480 = vmatprep.subr.bf16.mxu0 0
  %481 = vmatpush1.bf16.msra.mxu0 0
  %482 = vmatprep.subr.bf16.mxu0 0
  %483 = vmatpush1.bf16.msra.mxu0 0
  %484 = vmatprep.subr.bf16.mxu0 0
  %485 = vmatpush1.bf16.msra.mxu0 0
  %486 = vmatprep.mubr.bf16.mxu0 0
  %487 = vmatmul.mubr.bf16.gmra.mrb[0].mxu0 %v226
  %v488 = vpop.f32.mrb[0].mxu0
  %v489 = vadd.f32 %v452, %v488
  %v490 = vpop.f32.mrb[0].mxu0
  %v491 = vpop.f32.mrb[0].mxu0
  %v492 = vadd.f32 %v452, %v491
  %v493 = vpop.f32.mrb[0].mxu0
  %494 = vmatprep.mubr.bf16.mxu0 0
  %495 = vmatmul.mubr.bf16.gmra.mrb[0].mxu0 %v229
  %v496 = vpop.f32.mrb[0].mxu0
  %v497 = vadd.f32 %v452, %v496
  %v498 = vpop.f32.mrb[0].mxu0
  %v499 = vpop.f32.mrb[0].mxu0
  %v500 = vadd.f32 %v452, %v499
  %v501 = vpop.f32.mrb[0].mxu0
  %502 = vmatprep.mubr.bf16.mxu0 0
  %503 = vmatmul.mubr.bf16.gmra.mrb[0].mxu0 %v232
  %v504 = vpop.f32.mrb[0].mxu0
  %v505 = vadd.f32 %v452, %v504
  %v506 = vpop.f32.mrb[0].mxu0
  %v507 = vpop.f32.mrb[0].mxu0
  %v508 = vadd.f32 %v452, %v507
  %v509 = vpop.f32.mrb[0].mxu0
  %510 = vmatprep.mubr.bf16.mxu0 0
  %511 = vmatmul.mubr.bf16.gmra.mrb[0].mxu0 %v235
  %v512 = vpop.f32.mrb[0].mxu0
  %v513 = vadd.f32 %v452, %v512
  %v514 = vpop.f32.mrb[0].mxu0
  %v515 = vpop.f32.mrb[0].mxu0
  %v516 = vadd.f32 %v452, %v515
  %v517 = vpop.f32.mrb[0].mxu0
  %518 = vdwg.mxu0
  %519 = vst [vmem:[%s6] sm:$0xff] %v489
  %520 = vst [vmem:[%s6 + $0x8] sm:$0xff] %v492
  %521 = vst [vmem:[%s6 + $0x10] sm:$0xff] %v497
  %522 = vst [vmem:[%s6 + $0x18] sm:$0xff] %v500
  %523 = vst [vmem:[%s6 + $0x20] sm:$0xff] %v505
  %524 = vst [vmem:[%s6 + $0x28] sm:$0xff] %v508
  %525 = vst [vmem:[%s6 + $0x30] sm:$0xff] %v513
  %526 = vst [vmem:[%s6 + $0x38] sm:$0xff] %v516
  // Predicated region
  $region26: #{net_forward.1} parent=0 // pred_check
    _
  $region27: #{net_forward.1} parent=0 // pred_check_branch
    %528 = sbr.rel (0) target = $region29
  $region28: #{net_forward.1} parent=0 // pred_region
    _
  $region29: #{net_forward.1} parent=0 // pred_fallthru
    _
  // Predicated region
  $region30: #{net_forward.1} parent=0 // pred_check
    _
  $region31: #{net_forward.1} parent=0 // pred_check_branch
    %530 = sbr.rel (0) target = $region33
  $region32: #{net_forward.1} parent=0 // pred_region
    _
  $region33: #{net_forward.1} parent=0 // pred_fallthru
    _

</llo_original>
